<compile_context>
chip_gen: v7x
topology: tpu7x:2x2x1
jax: 0.10.0
libtpu: 0.0.40
codegen_flags: <defaults>
</compile_context>

<pallas_src>
import math

import jax
import jax.numpy as jnp
from jax import lax
from jax.experimental import pallas as pl
from jax.experimental.pallas import tpu as pltpu

# ----------------------------- model config ---------------------------------
B = 2        # batch
S = 8        # sequence length
H = 32       # hidden size
F = 128      # MLP intermediate size
V = 128      # vocab size
BS = B * S   # fused token-row count
EPS = 1e-5

# ---------------------- packed bf16 constant-slab layout ---------------------
# All row offsets are multiples of 16 so every static slice is bf16-tile aligned.
OFF_EMBED = 0            # (V, H)   embedding table
OFF_W2    = OFF_EMBED + V        # (F, H)
OFF_WQKV  = OFF_W2 + F           # (H, 3H)  q columns pre-scaled by 1/sqrt(H)
OFF_WO    = OFF_WQKV + H         # (H, H)
OFF_W1    = OFF_WO + H           # (H, F)
OFF_WLM   = OFF_W1 + H           # (H, V)
OFF_MASK  = OFF_WLM + H          # (BS, BS) additive bias: 0 / -1e30
OFF_LN    = OFF_MASK + BS        # 6 blocks of (BS, H): ln1_g, ln1_b, ln2_g, ln2_b, lnf_g, lnf_b
SLAB_ROWS = OFF_LN + 6 * BS      # = 496
SLAB_COLS = 128


def _layernorm(x, gamma, beta):
    # x, gamma, beta: (BS, H) f32 (gamma/beta pre-broadcast at prep time)
    mu = jnp.mean(x, axis=-1, keepdims=True)
    var = jnp.mean((x - mu) * (x - mu), axis=-1, keepdims=True)
    inv = lax.rsqrt(var + EPS)
    return (x - mu) * inv * gamma + beta


def _lm_forward_kernel(
    ids_ref,      # SMEM (BS,) int32 token ids
    slab_ref,     # VMEM (SLAB_ROWS, 128) bf16 packed constants
    out_ref,      # VMEM (BS, V) f32 logits
):
    f32 = jnp.float32
    bf16 = jnp.bfloat16

    # ---- token ids: SMEM scalars -> (BS, 1) column via scalar broadcasts ----
    row_iota = lax.broadcasted_iota(jnp.int32, (BS, 1), 0)
    ids_col = jnp.zeros((BS, 1), jnp.int32)
    for r in range(BS):                      # BS=16 unrolled scalar broadcasts+selects
        ids_col = jnp.where(row_iota == r, ids_ref[r], ids_col)

    # ---- embedding lookup as one-hot matmul on the otherwise idle MXU ----
    # NOTE: ids outside [0, V) produce an all-zero embedding row (wrapper guarantees
    # in-range ids); the pure-JAX reference (jnp.take) would clamp instead.
    vocab_iota = lax.broadcasted_iota(jnp.int32, (BS, V), 1)
    onehot = (vocab_iota == ids_col).astype(bf16)                       # (BS, V)
    embed = slab_ref[OFF_EMBED:OFF_EMBED + V, 0:H]                      # (V, H) bf16
    h = jnp.dot(onehot, embed, preferred_element_type=f32)              # (BS, H) f32

    # ---- LN params (pre-broadcast to (BS, H) at prep time) ----
    def ln_block(i):
        off = OFF_LN + i * BS
        return slab_ref[off:off + BS, 0:H].astype(f32)
    ln1_g, ln1_b = ln_block(0), ln_block(1)
    ln2_g, ln2_b = ln_block(2), ln_block(3)
    lnf_g, lnf_b = ln_block(4), ln_block(5)

    # ---- attention block (pre-LN, single head, causal within each batch) ----
    ln1 = _layernorm(h, ln1_g, ln1_b)
    wqkv = slab_ref[OFF_WQKV:OFF_WQKV + H, 0:3 * H]                     # (H, 3H) bf16
    qkv = jnp.dot(ln1.astype(bf16), wqkv, preferred_element_type=f32)   # (BS, 3H) f32
    q = qkv[:, 0:H]          # already scaled by 1/sqrt(H) via weight folding
    k = qkv[:, H:2 * H]
    v = qkv[:, 2 * H:3 * H]

    # q @ k^T (contract last dims), f32 accumulate
    scores = lax.dot_general(q.astype(bf16), k.astype(bf16),
                             (((1,), (1,)), ((), ())),
                             preferred_element_type=f32)                # (BS, BS)
    # static block-diagonal causal mask as additive bias (one vadd)
    scores = scores + slab_ref[OFF_MASK:OFF_MASK + BS, 0:BS].astype(f32)

    m = jnp.max(scores, axis=-1, keepdims=True)
    p = jnp.exp(scores - m)
    denom = jnp.sum(p, axis=-1, keepdims=True)
    attn = p * pl.reciprocal(denom, approx=True)                        # EUP vrcp

    a = jnp.dot(attn.astype(bf16), v.astype(bf16),
                preferred_element_type=f32)                             # (BS, H)
    wo = slab_ref[OFF_WO:OFF_WO + H, 0:H]
    h = h + jnp.dot(a.astype(bf16), wo, preferred_element_type=f32)

    # ---- MLP block (pre-LN, GELU [tanh approx, matches HF gelu_new]) ----
    ln2 = _layernorm(h, ln2_g, ln2_b)
    w1 = slab_ref[OFF_W1:OFF_W1 + H, 0:F]
    ff = jax.nn.gelu(jnp.dot(ln2.astype(bf16), w1,
                             preferred_element_type=f32))               # (BS, F)
    w2 = slab_ref[OFF_W2:OFF_W2 + F, 0:H]
    h = h + jnp.dot(ff.astype(bf16), w2, preferred_element_type=f32)

    # ---- final LN + LM head -> logits (lane-dense (BS, 128) f32 store) ----
    lnf = _layernorm(h, lnf_g, lnf_b)
    wlm = slab_ref[OFF_WLM:OFF_WLM + H, 0:V]
    out_ref[...] = jnp.dot(lnf.astype(bf16), wlm, preferred_element_type=f32)


def _cost_estimate():
    flops = 2 * BS * (V * H            # one-hot embedding matmul
                      + H * 3 * H      # fused qkv
                      + BS * H         # q @ k.T
                      + BS * H         # attn @ v
                      + H * H          # wo
                      + H * F          # w1
                      + F * H          # w2
                      + H * V)         # lm head
    transcendentals = BS * BS + BS * F + 4 * BS      # softmax exp + gelu + rsqrt/recip
    bytes_accessed = 2 * SLAB_ROWS * SLAB_COLS + 4 * BS + 4 * BS * V
    return pl.CostEstimate(flops=flops, transcendentals=transcendentals,
                           bytes_accessed=bytes_accessed)


@jax.jit
def simple_callable_hf_model_forward(input_ids, slab):
    """forward(input_ids) -> logits, mirroring SimpleCallableHFModel.forward."""
    ids = input_ids.reshape(BS).astype(jnp.int32)
    logits = pl.pallas_call(
        _lm_forward_kernel,
        out_shape=jax.ShapeDtypeStruct((BS, V), jnp.float32),
        in_specs=[
            pl.BlockSpec(memory_space=pltpu.MemorySpace.SMEM),   # token ids (scalars)
            pl.BlockSpec(memory_space=pltpu.MemorySpace.VMEM),   # packed constant slab
        ],
        out_specs=pl.BlockSpec(memory_space=pltpu.MemorySpace.VMEM),
        cost_estimate=_cost_estimate(),
    )(ids, slab)
    return logits.reshape(B, S, V)


# --------------------------- parameter handling ------------------------------
def init_params(key):
    ks = jax.random.split(key, 8)
    scale = 0.02
    return {
        "embed": scale * jax.random.normal(ks[0], (V, H), jnp.float32),
        "ln1_g": jnp.ones((H,), jnp.float32),
        "ln1_b": jnp.zeros((H,), jnp.float32),
        "wq": scale * jax.random.normal(ks[1], (H, H), jnp.float32),
        "wk": scale * jax.random.normal(ks[2], (H, H), jnp.float32),
        "wv": scale * jax.random.normal(ks[3], (H, H), jnp.float32),
        "wo": scale * jax.random.normal(ks[4], (H, H), jnp.float32),
        "ln2_g": jnp.ones((H,), jnp.float32),
        "ln2_b": jnp.zeros((H,), jnp.float32),
        "w1": scale * jax.random.normal(ks[5], (H, F), jnp.float32),
        "w2": scale * jax.random.normal(ks[6], (F, H), jnp.float32),
        "lnf_g": jnp.ones((H,), jnp.float32),
        "lnf_b": jnp.zeros((H,), jnp.float32),
        "wlm": scale * jax.random.normal(ks[7], (H, V), jnp.float32),
    }


def prepare_params(p):
    """One-time fusion: pack ALL constants into one lane-dense bf16 slab."""
    inv_sqrt_h = jnp.float32(1.0 / math.sqrt(H))
    slab = jnp.zeros((SLAB_ROWS, SLAB_COLS), jnp.float32)
    slab = slab.at[OFF_EMBED:OFF_EMBED + V, 0:H].set(p["embed"])
    slab = slab.at[OFF_W2:OFF_W2 + F, 0:H].set(p["w2"])
    wqkv = jnp.concatenate([p["wq"] * inv_sqrt_h, p["wk"], p["wv"]], axis=1)
    slab = slab.at[OFF_WQKV:OFF_WQKV + H, 0:3 * H].set(wqkv)
    slab = slab.at[OFF_WO:OFF_WO + H, 0:H].set(p["wo"])
    slab = slab.at[OFF_W1:OFF_W1 + H, 0:F].set(p["w1"])
    slab = slab.at[OFF_WLM:OFF_WLM + H, 0:V].set(p["wlm"])
    # static block-diagonal causal mask as additive bias
    r = jnp.arange(BS)[:, None]
    c = jnp.arange(BS)[None, :]
    keep = ((r // S) == (c // S)) & ((c % S) <= (r % S))
    slab = slab.at[OFF_MASK:OFF_MASK + BS, 0:BS].set(
        jnp.where(keep, 0.0, -1e30).astype(jnp.float32))
    # pre-broadcast LN params to (BS, H) (sublane-replicated; no in-kernel broadcast)
    for i, name in enumerate(["ln1_g", "ln1_b", "ln2_g", "ln2_b", "lnf_g", "lnf_b"]):
        off = OFF_LN + i * BS
        slab = slab.at[off:off + BS, 0:H].set(jnp.broadcast_to(p[name], (BS, H)))
    return slab.astype(jnp.bfloat16)


# ------------------------- pure-JAX reference (unfused, f32) -----------------
def reference_forward(input_ids, p):
    def ln(x, g, b):
        mu = jnp.mean(x, axis=-1, keepdims=True)
        var = jnp.mean((x - mu) ** 2, axis=-1, keepdims=True)
        return (x - mu) * lax.rsqrt(var + EPS) * g + b

    x = jnp.take(p["embed"], input_ids, axis=0).astype(jnp.float32)   # (B,S,H)

    def one_seq(h):
        l1 = ln(h, p["ln1_g"], p["ln1_b"])
        q = l1 @ p["wq"]; k = l1 @ p["wk"]; v = l1 @ p["wv"]
        sc = (q @ k.T) / math.sqrt(H)
        r = lax.broadcasted_iota(jnp.int32, (S, S), 0)
        c = lax.broadcasted_iota(jnp.int32, (S, S), 1)
        sc = jnp.where(c <= r, sc, jnp.float32(-1e30))
        pw = jax.nn.softmax(sc, axis=-1)
        h = h + (pw @ v) @ p["wo"]
        l2 = ln(h, p["ln2_g"], p["ln2_b"])
        h = h + jax.nn.gelu(l2 @ p["w1"]) @ p["w2"]
        return ln(h, p["lnf_g"], p["lnf_b"]) @ p["wlm"]

    return jax.vmap(one_seq)(x)


if __name__ == "__main__":
    key = jax.random.PRNGKey(0)
    pkey, dkey = jax.random.split(key)
    params = init_params(pkey)
    slab = prepare_params(params)

    input_ids = jax.random.randint(dkey, (B, S), 0, V, dtype=jnp.int32)

    logits = simple_callable_hf_model_forward(input_ids, slab)
    jax.block_until_ready(logits)
    assert logits.shape == (B, S, V) and logits.dtype == jnp.float32
    assert bool(jnp.all(jnp.isfinite(logits)))

    # Tolerance accounts for bf16 weights / matmul inputs (f32 accumulation) and
    # the approximate softmax reciprocal.
    ref = reference_forward(input_ids, params)
    assert bool(jnp.allclose(logits, ref, atol=2e-2, rtol=5e-2)), (
        float(jnp.max(jnp.abs(logits - ref))))

    # TODO(synk): save_pretrained / generate (autoregressive decode loop, KV cache)
    # have no clean single-kernel Pallas equivalent and are not implemented here.
    print("KERNEL_OK")
</pallas_src>

<mosaic_0001>
module attributes {stable_mosaic.version = 11 : i64} {
  func.func @_lm_forward_kernel(%arg0: memref<16xi32, #tpu.memory_space<smem>>, %arg1: memref<496x128xbf16, #tpu.memory_space<vmem>>, %arg2: memref<16x128xf32, #tpu.memory_space<vmem>>) attributes {dimension_semantics = [], scalar_prefetch = 0 : i64, scratch_operands = 0 : i64, tpu.core_type = #tpu.core_type<tc>} {
    %0 = tpu.iota {dimensions = array<i32: 0>} : vector<16x1xi32>
    %c0_i32 = arith.constant 0 : i32
    %1 = vector.broadcast %c0_i32 : i32 to vector<16x1xi32>
    %c0_i32_0 = arith.constant 0 : i32
    %2 = vector.broadcast %c0_i32_0 : i32 to vector<16x1xi32>
    %3 = arith.cmpi eq, %0, %2 : vector<16x1xi32>
    %c0 = arith.constant 0 : index
    %4 = memref.load %arg0[%c0] : memref<16xi32, #tpu.memory_space<smem>>
    %5 = vector.broadcast %4 : i32 to vector<16x1xi32>
    %6 = arith.select %3, %5, %1 : vector<16x1xi1>, vector<16x1xi32>
    %c1_i32 = arith.constant 1 : i32
    %7 = vector.broadcast %c1_i32 : i32 to vector<16x1xi32>
    %8 = arith.cmpi eq, %0, %7 : vector<16x1xi32>
    %c1 = arith.constant 1 : index
    %9 = memref.load %arg0[%c1] : memref<16xi32, #tpu.memory_space<smem>>
    %10 = vector.broadcast %9 : i32 to vector<16x1xi32>
    %11 = arith.select %8, %10, %6 : vector<16x1xi1>, vector<16x1xi32>
    %c2_i32 = arith.constant 2 : i32
    %12 = vector.broadcast %c2_i32 : i32 to vector<16x1xi32>
    %13 = arith.cmpi eq, %0, %12 : vector<16x1xi32>
    %c2 = arith.constant 2 : index
    %14 = memref.load %arg0[%c2] : memref<16xi32, #tpu.memory_space<smem>>
    %15 = vector.broadcast %14 : i32 to vector<16x1xi32>
    %16 = arith.select %13, %15, %11 : vector<16x1xi1>, vector<16x1xi32>
    %c3_i32 = arith.constant 3 : i32
    %17 = vector.broadcast %c3_i32 : i32 to vector<16x1xi32>
    %18 = arith.cmpi eq, %0, %17 : vector<16x1xi32>
    %c3 = arith.constant 3 : index
    %19 = memref.load %arg0[%c3] : memref<16xi32, #tpu.memory_space<smem>>
    %20 = vector.broadcast %19 : i32 to vector<16x1xi32>
    %21 = arith.select %18, %20, %16 : vector<16x1xi1>, vector<16x1xi32>
    %c4_i32 = arith.constant 4 : i32
    %22 = vector.broadcast %c4_i32 : i32 to vector<16x1xi32>
    %23 = arith.cmpi eq, %0, %22 : vector<16x1xi32>
    %c4 = arith.constant 4 : index
    %24 = memref.load %arg0[%c4] : memref<16xi32, #tpu.memory_space<smem>>
    %25 = vector.broadcast %24 : i32 to vector<16x1xi32>
    %26 = arith.select %23, %25, %21 : vector<16x1xi1>, vector<16x1xi32>
    %c5_i32 = arith.constant 5 : i32
    %27 = vector.broadcast %c5_i32 : i32 to vector<16x1xi32>
    %28 = arith.cmpi eq, %0, %27 : vector<16x1xi32>
    %c5 = arith.constant 5 : index
    %29 = memref.load %arg0[%c5] : memref<16xi32, #tpu.memory_space<smem>>
    %30 = vector.broadcast %29 : i32 to vector<16x1xi32>
    %31 = arith.select %28, %30, %26 : vector<16x1xi1>, vector<16x1xi32>
    %c6_i32 = arith.constant 6 : i32
    %32 = vector.broadcast %c6_i32 : i32 to vector<16x1xi32>
    %33 = arith.cmpi eq, %0, %32 : vector<16x1xi32>
    %c6 = arith.constant 6 : index
    %34 = memref.load %arg0[%c6] : memref<16xi32, #tpu.memory_space<smem>>
    %35 = vector.broadcast %34 : i32 to vector<16x1xi32>
    %36 = arith.select %33, %35, %31 : vector<16x1xi1>, vector<16x1xi32>
    %c7_i32 = arith.constant 7 : i32
    %37 = vector.broadcast %c7_i32 : i32 to vector<16x1xi32>
    %38 = arith.cmpi eq, %0, %37 : vector<16x1xi32>
    %c7 = arith.constant 7 : index
    %39 = memref.load %arg0[%c7] : memref<16xi32, #tpu.memory_space<smem>>
    %40 = vector.broadcast %39 : i32 to vector<16x1xi32>
    %41 = arith.select %38, %40, %36 : vector<16x1xi1>, vector<16x1xi32>
    %c8_i32 = arith.constant 8 : i32
    %42 = vector.broadcast %c8_i32 : i32 to vector<16x1xi32>
    %43 = arith.cmpi eq, %0, %42 : vector<16x1xi32>
    %c8 = arith.constant 8 : index
    %44 = memref.load %arg0[%c8] : memref<16xi32, #tpu.memory_space<smem>>
    %45 = vector.broadcast %44 : i32 to vector<16x1xi32>
    %46 = arith.select %43, %45, %41 : vector<16x1xi1>, vector<16x1xi32>
    %c9_i32 = arith.constant 9 : i32
    %47 = vector.broadcast %c9_i32 : i32 to vector<16x1xi32>
    %48 = arith.cmpi eq, %0, %47 : vector<16x1xi32>
    %c9 = arith.constant 9 : index
    %49 = memref.load %arg0[%c9] : memref<16xi32, #tpu.memory_space<smem>>
    %50 = vector.broadcast %49 : i32 to vector<16x1xi32>
    %51 = arith.select %48, %50, %46 : vector<16x1xi1>, vector<16x1xi32>
    %c10_i32 = arith.constant 10 : i32
    %52 = vector.broadcast %c10_i32 : i32 to vector<16x1xi32>
    %53 = arith.cmpi eq, %0, %52 : vector<16x1xi32>
    %c10 = arith.constant 10 : index
    %54 = memref.load %arg0[%c10] : memref<16xi32, #tpu.memory_space<smem>>
    %55 = vector.broadcast %54 : i32 to vector<16x1xi32>
    %56 = arith.select %53, %55, %51 : vector<16x1xi1>, vector<16x1xi32>
    %c11_i32 = arith.constant 11 : i32
    %57 = vector.broadcast %c11_i32 : i32 to vector<16x1xi32>
    %58 = arith.cmpi eq, %0, %57 : vector<16x1xi32>
    %c11 = arith.constant 11 : index
    %59 = memref.load %arg0[%c11] : memref<16xi32, #tpu.memory_space<smem>>
    %60 = vector.broadcast %59 : i32 to vector<16x1xi32>
    %61 = arith.select %58, %60, %56 : vector<16x1xi1>, vector<16x1xi32>
    %c12_i32 = arith.constant 12 : i32
    %62 = vector.broadcast %c12_i32 : i32 to vector<16x1xi32>
    %63 = arith.cmpi eq, %0, %62 : vector<16x1xi32>
    %c12 = arith.constant 12 : index
    %64 = memref.load %arg0[%c12] : memref<16xi32, #tpu.memory_space<smem>>
    %65 = vector.broadcast %64 : i32 to vector<16x1xi32>
    %66 = arith.select %63, %65, %61 : vector<16x1xi1>, vector<16x1xi32>
    %c13_i32 = arith.constant 13 : i32
    %67 = vector.broadcast %c13_i32 : i32 to vector<16x1xi32>
    %68 = arith.cmpi eq, %0, %67 : vector<16x1xi32>
    %c13 = arith.constant 13 : index
    %69 = memref.load %arg0[%c13] : memref<16xi32, #tpu.memory_space<smem>>
    %70 = vector.broadcast %69 : i32 to vector<16x1xi32>
    %71 = arith.select %68, %70, %66 : vector<16x1xi1>, vector<16x1xi32>
    %c14_i32 = arith.constant 14 : i32
    %72 = vector.broadcast %c14_i32 : i32 to vector<16x1xi32>
    %73 = arith.cmpi eq, %0, %72 : vector<16x1xi32>
    %c14 = arith.constant 14 : index
    %74 = memref.load %arg0[%c14] : memref<16xi32, #tpu.memory_space<smem>>
    %75 = vector.broadcast %74 : i32 to vector<16x1xi32>
    %76 = arith.select %73, %75, %71 : vector<16x1xi1>, vector<16x1xi32>
    %c15_i32 = arith.constant 15 : i32
    %77 = vector.broadcast %c15_i32 : i32 to vector<16x1xi32>
    %78 = arith.cmpi eq, %0, %77 : vector<16x1xi32>
    %c15 = arith.constant 15 : index
    %79 = memref.load %arg0[%c15] : memref<16xi32, #tpu.memory_space<smem>>
    %80 = vector.broadcast %79 : i32 to vector<16x1xi32>
    %81 = arith.select %78, %80, %76 : vector<16x1xi1>, vector<16x1xi32>
    %82 = tpu.iota {dimensions = array<i32: 1>} : vector<16x128xi32>
    %83 = vector.broadcast %81 : vector<16x1xi32> to vector<16x128xi32>
    %84 = arith.cmpi eq, %82, %83 : vector<16x128xi32>
    %85 = arith.extui %84 : vector<16x128xi1> to vector<16x128xi32>
    %86 = arith.sitofp %85 : vector<16x128xi32> to vector<16x128xf32>
    %87 = arith.truncf %86 : vector<16x128xf32> to vector<16x128xbf16>
    %c0_1 = arith.constant 0 : index
    %c0_2 = arith.constant 0 : index
    %88 = vector.load %arg1[%c0_1, %c0_2] : memref<496x128xbf16, #tpu.memory_space<vmem>>, vector<128x32xbf16>
    %cst = arith.constant dense<0.000000e+00> : vector<16x32xf32>
    %89 = tpu.matmul %87, %88, %cst {dimension_numbers = #tpu.dot_dimension_numbers<[1], [0], [0], [1], [0, 0, 1, 1], [], []>} : vector<16x128xbf16>, vector<128x32xbf16>, vector<16x32xf32> -> vector<16x32xf32>
    %c400 = arith.constant 400 : index
    %c0_3 = arith.constant 0 : index
    %90 = vector.load %arg1[%c400, %c0_3] : memref<496x128xbf16, #tpu.memory_space<vmem>>, vector<16x32xbf16>
    %91 = arith.extf %90 : vector<16x32xbf16> to vector<16x32xf32>
    %c416 = arith.constant 416 : index
    %c0_4 = arith.constant 0 : index
    %92 = vector.load %arg1[%c416, %c0_4] : memref<496x128xbf16, #tpu.memory_space<vmem>>, vector<16x32xbf16>
    %93 = arith.extf %92 : vector<16x32xbf16> to vector<16x32xf32>
    %c432 = arith.constant 432 : index
    %c0_5 = arith.constant 0 : index
    %94 = vector.load %arg1[%c432, %c0_5] : memref<496x128xbf16, #tpu.memory_space<vmem>>, vector<16x32xbf16>
    %95 = arith.extf %94 : vector<16x32xbf16> to vector<16x32xf32>
    %c448 = arith.constant 448 : index
    %c0_6 = arith.constant 0 : index
    %96 = vector.load %arg1[%c448, %c0_6] : memref<496x128xbf16, #tpu.memory_space<vmem>>, vector<16x32xbf16>
    %97 = arith.extf %96 : vector<16x32xbf16> to vector<16x32xf32>
    %c464 = arith.constant 464 : index
    %c0_7 = arith.constant 0 : index
    %98 = vector.load %arg1[%c464, %c0_7] : memref<496x128xbf16, #tpu.memory_space<vmem>>, vector<16x32xbf16>
    %99 = arith.extf %98 : vector<16x32xbf16> to vector<16x32xf32>
    %c480 = arith.constant 480 : index
    %c0_8 = arith.constant 0 : index
    %100 = vector.load %arg1[%c480, %c0_8] : memref<496x128xbf16, #tpu.memory_space<vmem>>, vector<16x32xbf16>
    %101 = arith.extf %100 : vector<16x32xbf16> to vector<16x32xf32>
    %cst_9 = arith.constant dense<0.000000e+00> : vector<16xf32>
    %102 = vector.multi_reduction <add>, %89, %cst_9 [1] : vector<16x32xf32> to vector<16xf32>
    %103 = vector.shape_cast %102 : vector<16xf32> to vector<16x1xf32>
    %cst_10 = arith.constant 3.200000e+01 : f32
    %104 = vector.broadcast %cst_10 : f32 to vector<16x1xf32>
    %105 = arith.divf %103, %104 : vector<16x1xf32>
    %106 = vector.broadcast %105 : vector<16x1xf32> to vector<16x32xf32>
    %107 = arith.subf %89, %106 : vector<16x32xf32>
    %108 = vector.broadcast %105 : vector<16x1xf32> to vector<16x32xf32>
    %109 = arith.subf %89, %108 : vector<16x32xf32>
    %110 = arith.mulf %107, %109 : vector<16x32xf32>
    %cst_11 = arith.constant dense<0.000000e+00> : vector<16xf32>
    %111 = vector.multi_reduction <add>, %110, %cst_11 [1] : vector<16x32xf32> to vector<16xf32>
    %112 = vector.shape_cast %111 : vector<16xf32> to vector<16x1xf32>
    %cst_12 = arith.constant 3.200000e+01 : f32
    %113 = vector.broadcast %cst_12 : f32 to vector<16x1xf32>
    %114 = arith.divf %112, %113 : vector<16x1xf32>
    %cst_13 = arith.constant 9.99999974E-6 : f32
    %115 = vector.broadcast %cst_13 : f32 to vector<16x1xf32>
    %116 = arith.addf %114, %115 : vector<16x1xf32>
    %117 = math.rsqrt %116 : vector<16x1xf32>
    %118 = vector.broadcast %105 : vector<16x1xf32> to vector<16x32xf32>
    %119 = arith.subf %89, %118 : vector<16x32xf32>
    %120 = vector.broadcast %117 : vector<16x1xf32> to vector<16x32xf32>
    %121 = arith.mulf %119, %120 : vector<16x32xf32>
    %122 = arith.mulf %121, %91 : vector<16x32xf32>
    %123 = arith.addf %122, %93 : vector<16x32xf32>
    %c256 = arith.constant 256 : index
    %c0_14 = arith.constant 0 : index
    %124 = vector.load %arg1[%c256, %c0_14] : memref<496x128xbf16, #tpu.memory_space<vmem>>, vector<32x96xbf16>
    %125 = arith.truncf %123 : vector<16x32xf32> to vector<16x32xbf16>
    %cst_15 = arith.constant dense<0.000000e+00> : vector<16x96xf32>
    %126 = tpu.matmul %125, %124, %cst_15 {dimension_numbers = #tpu.dot_dimension_numbers<[1], [0], [0], [1], [0, 0, 1, 1], [], []>} : vector<16x32xbf16>, vector<32x96xbf16>, vector<16x96xf32> -> vector<16x96xf32>
    %127 = vector.extract_strided_slice %126 {offsets = [0, 0], sizes = [16, 32], strides = [1, 1]} : vector<16x96xf32> to vector<16x32xf32>
    %128 = vector.extract_strided_slice %126 {offsets = [0, 32], sizes = [16, 32], strides = [1, 1]} : vector<16x96xf32> to vector<16x32xf32>
    %129 = vector.extract_strided_slice %126 {offsets = [0, 64], sizes = [16, 32], strides = [1, 1]} : vector<16x96xf32> to vector<16x32xf32>
    %130 = arith.truncf %127 : vector<16x32xf32> to vector<16x32xbf16>
    %131 = arith.truncf %128 : vector<16x32xf32> to vector<16x32xbf16>
    %cst_16 = arith.constant dense<0.000000e+00> : vector<16x16xf32>
    %132 = tpu.matmul %130, %131, %cst_16 {dimension_numbers = #tpu.dot_dimension_numbers<[1], [1], [0], [0], [0, 0, 1, 0], [], []>} : vector<16x32xbf16>, vector<16x32xbf16>, vector<16x16xf32> -> vector<16x16xf32>
    %c384 = arith.constant 384 : index
    %c0_17 = arith.constant 0 : index
    %133 = vector.load %arg1[%c384, %c0_17] : memref<496x128xbf16, #tpu.memory_space<vmem>>, vector<16x16xbf16>
    %134 = arith.extf %133 : vector<16x16xbf16> to vector<16x16xf32>
    %135 = arith.addf %132, %134 : vector<16x16xf32>
    %cst_18 = arith.constant dense<0xFF800000> : vector<16xf32>
    %136 = vector.multi_reduction <maximumf>, %135, %cst_18 [1] : vector<16x16xf32> to vector<16xf32>
    %137 = vector.shape_cast %136 : vector<16xf32> to vector<16x1xf32>
    %138 = vector.broadcast %137 : vector<16x1xf32> to vector<16x16xf32>
    %139 = arith.subf %135, %138 : vector<16x16xf32>
    %140 = math.exp %139 : vector<16x16xf32>
    %cst_19 = arith.constant dense<0.000000e+00> : vector<16xf32>
    %141 = vector.multi_reduction <add>, %140, %cst_19 [1] : vector<16x16xf32> to vector<16xf32>
    %142 = vector.shape_cast %141 : vector<16xf32> to vector<16x1xf32>
    %143 = tpu.reciprocal %142 {approx = true} : vector<16x1xf32> -> vector<16x1xf32>
    %144 = vector.broadcast %143 : vector<16x1xf32> to vector<16x16xf32>
    %145 = arith.mulf %140, %144 : vector<16x16xf32>
    %146 = arith.truncf %145 : vector<16x16xf32> to vector<16x16xbf16>
    %147 = arith.truncf %129 : vector<16x32xf32> to vector<16x32xbf16>
    %cst_20 = arith.constant dense<0.000000e+00> : vector<16x32xf32>
    %148 = tpu.matmul %146, %147, %cst_20 {dimension_numbers = #tpu.dot_dimension_numbers<[1], [0], [0], [1], [0, 0, 1, 1], [], []>} : vector<16x16xbf16>, vector<16x32xbf16>, vector<16x32xf32> -> vector<16x32xf32>
    %c288 = arith.constant 288 : index
    %c0_21 = arith.constant 0 : index
    %149 = vector.load %arg1[%c288, %c0_21] : memref<496x128xbf16, #tpu.memory_space<vmem>>, vector<32x32xbf16>
    %150 = arith.truncf %148 : vector<16x32xf32> to vector<16x32xbf16>
    %cst_22 = arith.constant dense<0.000000e+00> : vector<16x32xf32>
    %151 = tpu.matmul %150, %149, %cst_22 {dimension_numbers = #tpu.dot_dimension_numbers<[1], [0], [0], [1], [0, 0, 1, 1], [], []>} : vector<16x32xbf16>, vector<32x32xbf16>, vector<16x32xf32> -> vector<16x32xf32>
    %152 = arith.addf %89, %151 : vector<16x32xf32>
    %cst_23 = arith.constant dense<0.000000e+00> : vector<16xf32>
    %153 = vector.multi_reduction <add>, %152, %cst_23 [1] : vector<16x32xf32> to vector<16xf32>
    %154 = vector.shape_cast %153 : vector<16xf32> to vector<16x1xf32>
    %cst_24 = arith.constant 3.200000e+01 : f32
    %155 = vector.broadcast %cst_24 : f32 to vector<16x1xf32>
    %156 = arith.divf %154, %155 : vector<16x1xf32>
    %157 = vector.broadcast %156 : vector<16x1xf32> to vector<16x32xf32>
    %158 = arith.subf %152, %157 : vector<16x32xf32>
    %159 = vector.broadcast %156 : vector<16x1xf32> to vector<16x32xf32>
    %160 = arith.subf %152, %159 : vector<16x32xf32>
    %161 = arith.mulf %158, %160 : vector<16x32xf32>
    %cst_25 = arith.constant dense<0.000000e+00> : vector<16xf32>
    %162 = vector.multi_reduction <add>, %161, %cst_25 [1] : vector<16x32xf32> to vector<16xf32>
    %163 = vector.shape_cast %162 : vector<16xf32> to vector<16x1xf32>
    %cst_26 = arith.constant 3.200000e+01 : f32
    %164 = vector.broadcast %cst_26 : f32 to vector<16x1xf32>
    %165 = arith.divf %163, %164 : vector<16x1xf32>
    %cst_27 = arith.constant 9.99999974E-6 : f32
    %166 = vector.broadcast %cst_27 : f32 to vector<16x1xf32>
    %167 = arith.addf %165, %166 : vector<16x1xf32>
    %168 = math.rsqrt %167 : vector<16x1xf32>
    %169 = vector.broadcast %156 : vector<16x1xf32> to vector<16x32xf32>
    %170 = arith.subf %152, %169 : vector<16x32xf32>
    %171 = vector.broadcast %168 : vector<16x1xf32> to vector<16x32xf32>
    %172 = arith.mulf %170, %171 : vector<16x32xf32>
    %173 = arith.mulf %172, %95 : vector<16x32xf32>
    %174 = arith.addf %173, %97 : vector<16x32xf32>
    %c320 = arith.constant 320 : index
    %c0_28 = arith.constant 0 : index
    %175 = vector.load %arg1[%c320, %c0_28] : memref<496x128xbf16, #tpu.memory_space<vmem>>, vector<32x128xbf16>
    %176 = arith.truncf %174 : vector<16x32xf32> to vector<16x32xbf16>
    %cst_29 = arith.constant dense<0.000000e+00> : vector<16x128xf32>
    %177 = tpu.matmul %176, %175, %cst_29 {dimension_numbers = #tpu.dot_dimension_numbers<[1], [0], [0], [1], [0, 0, 1, 1], [], []>} : vector<16x32xbf16>, vector<32x128xbf16>, vector<16x128xf32> -> vector<16x128xf32>
    %178 = arith.mulf %177, %177 : vector<16x128xf32>
    %179 = arith.mulf %177, %178 : vector<16x128xf32>
    %cst_30 = arith.constant 4.471500e-02 : f32
    %180 = vector.broadcast %cst_30 : f32 to vector<16x128xf32>
    %181 = arith.mulf %180, %179 : vector<16x128xf32>
    %182 = arith.addf %177, %181 : vector<16x128xf32>
    %cst_31 = arith.constant 0.797884583 : f32
    %183 = vector.broadcast %cst_31 : f32 to vector<16x128xf32>
    %184 = arith.mulf %183, %182 : vector<16x128xf32>
    %185 = math.tanh %184 : vector<16x128xf32>
    %cst_32 = arith.constant 1.000000e+00 : f32
    %186 = vector.broadcast %cst_32 : f32 to vector<16x128xf32>
    %187 = arith.addf %186, %185 : vector<16x128xf32>
    %cst_33 = arith.constant 5.000000e-01 : f32
    %188 = vector.broadcast %cst_33 : f32 to vector<16x128xf32>
    %189 = arith.mulf %188, %187 : vector<16x128xf32>
    %190 = arith.mulf %177, %189 : vector<16x128xf32>
    %c128 = arith.constant 128 : index
    %c0_34 = arith.constant 0 : index
    %191 = vector.load %arg1[%c128, %c0_34] : memref<496x128xbf16, #tpu.memory_space<vmem>>, vector<128x32xbf16>
    %192 = arith.truncf %190 : vector<16x128xf32> to vector<16x128xbf16>
    %cst_35 = arith.constant dense<0.000000e+00> : vector<16x32xf32>
    %193 = tpu.matmul %192, %191, %cst_35 {dimension_numbers = #tpu.dot_dimension_numbers<[1], [0], [0], [1], [0, 0, 1, 1], [], []>} : vector<16x128xbf16>, vector<128x32xbf16>, vector<16x32xf32> -> vector<16x32xf32>
    %194 = arith.addf %152, %193 : vector<16x32xf32>
    %cst_36 = arith.constant dense<0.000000e+00> : vector<16xf32>
    %195 = vector.multi_reduction <add>, %194, %cst_36 [1] : vector<16x32xf32> to vector<16xf32>
    %196 = vector.shape_cast %195 : vector<16xf32> to vector<16x1xf32>
    %cst_37 = arith.constant 3.200000e+01 : f32
    %197 = vector.broadcast %cst_37 : f32 to vector<16x1xf32>
    %198 = arith.divf %196, %197 : vector<16x1xf32>
    %199 = vector.broadcast %198 : vector<16x1xf32> to vector<16x32xf32>
    %200 = arith.subf %194, %199 : vector<16x32xf32>
    %201 = vector.broadcast %198 : vector<16x1xf32> to vector<16x32xf32>
    %202 = arith.subf %194, %201 : vector<16x32xf32>
    %203 = arith.mulf %200, %202 : vector<16x32xf32>
    %cst_38 = arith.constant dense<0.000000e+00> : vector<16xf32>
    %204 = vector.multi_reduction <add>, %203, %cst_38 [1] : vector<16x32xf32> to vector<16xf32>
    %205 = vector.shape_cast %204 : vector<16xf32> to vector<16x1xf32>
    %cst_39 = arith.constant 3.200000e+01 : f32
    %206 = vector.broadcast %cst_39 : f32 to vector<16x1xf32>
    %207 = arith.divf %205, %206 : vector<16x1xf32>
    %cst_40 = arith.constant 9.99999974E-6 : f32
    %208 = vector.broadcast %cst_40 : f32 to vector<16x1xf32>
    %209 = arith.addf %207, %208 : vector<16x1xf32>
    %210 = math.rsqrt %209 : vector<16x1xf32>
    %211 = vector.broadcast %198 : vector<16x1xf32> to vector<16x32xf32>
    %212 = arith.subf %194, %211 : vector<16x32xf32>
    %213 = vector.broadcast %210 : vector<16x1xf32> to vector<16x32xf32>
    %214 = arith.mulf %212, %213 : vector<16x32xf32>
    %215 = arith.mulf %214, %99 : vector<16x32xf32>
    %216 = arith.addf %215, %101 : vector<16x32xf32>
    %c352 = arith.constant 352 : index
    %c0_41 = arith.constant 0 : index
    %217 = vector.load %arg1[%c352, %c0_41] : memref<496x128xbf16, #tpu.memory_space<vmem>>, vector<32x128xbf16>
    %218 = arith.truncf %216 : vector<16x32xf32> to vector<16x32xbf16>
    %cst_42 = arith.constant dense<0.000000e+00> : vector<16x128xf32>
    %219 = tpu.matmul %218, %217, %cst_42 {dimension_numbers = #tpu.dot_dimension_numbers<[1], [0], [0], [1], [0, 0, 1, 1], [], []>} : vector<16x32xbf16>, vector<32x128xbf16>, vector<16x128xf32> -> vector<16x128xf32>
    %c0_43 = arith.constant 0 : index
    %c0_44 = arith.constant 0 : index
    %220 = vector.load %arg2[%c0_43, %c0_44] : memref<16x128xf32, #tpu.memory_space<vmem>>, vector<16x128xf32>
    tpu.vector_store %arg2[%c0_43, %c0_44], %219 {strides = array<i32>} : memref<16x128xf32, #tpu.memory_space<vmem>>, vector<16x128xf32>,
    return
  }
}

</mosaic_0001>

<llo_original>
// kernel: simple_callable_hf_model_forward.1
$region0: #{simple_callable_hf_model_forward.1}
  #allocation0 [shape = 'u32[]', space=smem, size = 0x4, offset = 0x4, fixed_abs, tag = 'smem constant byte address 0x4 - core index']
  #allocation1 [shape = 'u32[144,128]{1,0:T(1,128)}', space=vmem, size = 0x12000, scoped, tag = 'internal scratch']
  %s0 = inlined_call_operand.vmem [shape: s32[16], index: 0, kind: input, shape index: {}]
  %s1 = inlined_call_operand.hbm [shape: bf16[496,128], index: 1, kind: input, shape index: {}]
  %s2 = inlined_call_operand.hbm [shape: f32[16,128], index: 2, kind: output, shape index: {}]
  %s3 = sld [smem:[#allocation0]]
  $region26: #{simple_callable_hf_model_forward.1} parent=0
    _
  %s5 = ssub.s32 1, %s3
  %s6 = scalar_select 0, %s5, %s3
  $region1: #{simple_callable_hf_model_forward.1} parent=0
    #allocation2 [shape = 'u8[512]{0}', space=smem, size = 0x200, scoped, tag = 'input window, operand 0, single buffered']
    #allocation3 [shape = 's32[1]{0}', space=sflag, size = 0x4, scoped, tag = 'scoped memory for simple_callable_hf_model_forward.1']
    #allocation4 [shape = 's32[1]{0}', space=sflag, size = 0x4, scoped, tag = 'scoped memory for simple_callable_hf_model_forward.1']
    #allocation5 [shape = 's32[1]{0}', space=sflag, size = 0x4, scoped, tag = 'scoped memory for simple_callable_hf_model_forward.1']
    #allocation6 [shape = 'u8[126976]{0}', space=vmem, size = 0x1f000, scoped, tag = 'input window, operand 1, single buffered']
    #allocation7 [shape = 'u8[8192]{0}', space=vmem, size = 0x2000, scoped, tag = 'output window, operand 0, single buffered']
    %7 = vsyncpa [#allocation5], 0
    %8 = vsyncpa [#allocation3], 0
    %9 = vsyncpa [#allocation4], 0
    // Predicated region
    $region2: #{simple_callable_hf_model_forward.1} parent=1 // pred_check
      _
    $region3: #{simple_callable_hf_model_forward.1} parent=1 // pred_check_branch
      %11 = sbr.rel (0) target = $region5
    $region4: #{simple_callable_hf_model_forward.1} parent=1 // pred_region
      %s13 = ssub.s32 16, 16
      %14 = vsyncadd [#allocation5], %s13
      %s16 = sshll.u32 %s0, 4
      %s17 = int_to_ptr.vmem [resolvable:$true] %s16
      %19 = dma.vmem_to_smem %s17, 16, [#allocation2], [#allocation5]
    $region5: #{simple_callable_hf_model_forward.1} parent=1 // pred_fallthru
      _
    // Predicated region
    $region6: #{simple_callable_hf_model_forward.1} parent=1 // pred_check
      _
    $region7: #{simple_callable_hf_model_forward.1} parent=1 // pred_check_branch
      %21 = sbr.rel (0) target = $region9
    $region8: #{simple_callable_hf_model_forward.1} parent=1 // pred_region
      %s23 = ssub.s32 3968, 3968
      %24 = vsyncadd [#allocation3], %s23
      %s25 = sshll.u32 [#allocation6], 4
      %s26 = int_to_ptr.vmem [resolvable:$true] %s25
      %31 = dma.hbm_to_vmem [thread:$0]  %s1, 3968, %s26, [#allocation3], 64, 64, 4
    $region9: #{simple_callable_hf_model_forward.1} parent=1 // pred_fallthru
      _
    // Predicated region
    $region10: #{simple_callable_hf_model_forward.1} parent=1 // pred_check
      _
    $region11: #{simple_callable_hf_model_forward.1} parent=1 // pred_check_branch
      %33 = sbr.rel (0) target = $region13
    $region12: #{simple_callable_hf_model_forward.1} parent=1 // pred_region
      %34 = dma.done [#allocation5], 16
    $region13: #{simple_callable_hf_model_forward.1} parent=1 // pred_fallthru
      _
    // Predicated region
    $region14: #{simple_callable_hf_model_forward.1} parent=1 // pred_check
      _
    $region15: #{simple_callable_hf_model_forward.1} parent=1 // pred_check_branch
      %36 = sbr.rel (0) target = $region17
    $region16: #{simple_callable_hf_model_forward.1} parent=1 // pred_region
      %37 = dma.done [#allocation3], 3968
    $region17: #{simple_callable_hf_model_forward.1} parent=1 // pred_fallthru
      _
    %38 = sfence
    %v40 = vlaneseq
    %v41 = vshrl.u32 %v40, 7
    %v42 = vadd.s32 %v41, 8
    %vm43 = vcmp.eq.s32.totalorder %v41, 0
    %vm44 = vcmp.eq.s32.totalorder %v42, 0
    %s45 = sld [smem:[#allocation2]]
    %v46 = vstv %s45
    %v47 = vsel %vm43, %v46, 0
    %v48 = vsel %vm44, %v46, 0
    %vm49 = vcmp.eq.s32.totalorder %v41, 1
    %vm50 = vcmp.eq.s32.totalorder %v42, 1
    %s51 = sld [smem:[#allocation2 + $0x1]]
    %v52 = vstv %s51
    %v53 = vsel %vm49, %v52, %v47
    %v54 = vsel %vm50, %v52, %v48
    %vm55 = vcmp.eq.s32.totalorder %v41, 2
    %vm56 = vcmp.eq.s32.totalorder %v42, 2
    %s57 = sld [smem:[#allocation2 + $0x2]]
    %v58 = vstv %s57
    %v59 = vsel %vm55, %v58, %v53
    %v60 = vsel %vm56, %v58, %v54
    %vm61 = vcmp.eq.s32.totalorder %v41, 3
    %vm62 = vcmp.eq.s32.totalorder %v42, 3
    %s63 = sld [smem:[#allocation2 + $0x3]]
    %v64 = vstv %s63
    %v65 = vsel %vm61, %v64, %v59
    %v66 = vsel %vm62, %v64, %v60
    %vm67 = vcmp.eq.s32.totalorder %v41, 4
    %vm68 = vcmp.eq.s32.totalorder %v42, 4
    %s69 = sld [smem:[#allocation2 + $0x4]]
    %v70 = vstv %s69
    %v71 = vsel %vm67, %v70, %v65
    %v72 = vsel %vm68, %v70, %v66
    %vm73 = vcmp.eq.s32.totalorder %v41, 5
    %vm74 = vcmp.eq.s32.totalorder %v42, 5
    %s75 = sld [smem:[#allocation2 + $0x5]]
    %v76 = vstv %s75
    %v77 = vsel %vm73, %v76, %v71
    %v78 = vsel %vm74, %v76, %v72
    %vm79 = vcmp.eq.s32.totalorder %v41, 6
    %vm80 = vcmp.eq.s32.totalorder %v42, 6
    %s81 = sld [smem:[#allocation2 + $0x6]]
    %v82 = vstv %s81
    %v83 = vsel %vm79, %v82, %v77
    %v84 = vsel %vm80, %v82, %v78
    %vm85 = vcmp.eq.s32.totalorder %v41, 7
    %vm86 = vcmp.eq.s32.totalorder %v42, 7
    %s87 = sld [smem:[#allocation2 + $0x7]]
    %v88 = vstv %s87
    %v89 = vsel %vm85, %v88, %v83
    %v90 = vsel %vm86, %v88, %v84
    %vm91 = vcmp.eq.s32.totalorder %v41, 8
    %vm92 = vcmp.eq.s32.totalorder %v42, 8
    %s93 = sld [smem:[#allocation2 + $0x8]]
    %v94 = vstv %s93
    %v95 = vsel %vm91, %v94, %v89
    %v96 = vsel %vm92, %v94, %v90
    %vm97 = vcmp.eq.s32.totalorder %v41, 9
    %vm98 = vcmp.eq.s32.totalorder %v42, 9
    %s99 = sld [smem:[#allocation2 + $0x9]]
    %v100 = vstv %s99
    %v101 = vsel %vm97, %v100, %v95
    %v102 = vsel %vm98, %v100, %v96
    %vm103 = vcmp.eq.s32.totalorder %v41, 10
    %vm104 = vcmp.eq.s32.totalorder %v42, 10
    %s105 = sld [smem:[#allocation2 + $0xa]]
    %v106 = vstv %s105
    %v107 = vsel %vm103, %v106, %v101
    %v108 = vsel %vm104, %v106, %v102
    %vm109 = vcmp.eq.s32.totalorder %v41, 11
    %vm110 = vcmp.eq.s32.totalorder %v42, 11
    %s111 = sld [smem:[#allocation2 + $0xb]]
    %v112 = vstv %s111
    %v113 = vsel %vm109, %v112, %v107
    %v114 = vsel %vm110, %v112, %v108
    %vm115 = vcmp.eq.s32.totalorder %v41, 12
    %vm116 = vcmp.eq.s32.totalorder %v42, 12
    %s117 = sld [smem:[#allocation2 + $0xc]]
    %v118 = vstv %s117
    %v119 = vsel %vm115, %v118, %v113
    %v120 = vsel %vm116, %v118, %v114
    %vm121 = vcmp.eq.s32.totalorder %v41, 13
    %vm122 = vcmp.eq.s32.totalorder %v42, 13
    %s123 = sld [smem:[#allocation2 + $0xd]]
    %v124 = vstv %s123
    %v125 = vsel %vm121, %v124, %v119
    %v126 = vsel %vm122, %v124, %v120
    %vm127 = vcmp.eq.s32.totalorder %v41, 14
    %vm128 = vcmp.eq.s32.totalorder %v42, 14
    %s129 = sld [smem:[#allocation2 + $0xe]]
    %v130 = vstv %s129
    %v131 = vsel %vm127, %v130, %v125
    %v132 = vsel %vm128, %v130, %v126
    %vm133 = vcmp.eq.s32.totalorder %v41, 15
    %vm134 = vcmp.eq.s32.totalorder %v42, 15
    %s135 = sld [smem:[#allocation2 + $0xf]]
    %v136 = vstv %s135
    %v137 = vsel %vm133, %v136, %v131
    %v138 = vsel %vm134, %v136, %v132
    %v139 = vlaneseq
    %v140 = vand.u32 %v139, 127
    %vm141 = vcmp.eq.s32.totalorder %v140, %v137
    %vm142 = vcmp.eq.s32.totalorder %v140, %v138
    %v143 = vsel %vm141, 1, 0
    %v144 = vsel %vm142, 1, 0
    %v145 = vcvt.s32.f32 %v143
    %v146 = vcvt.s32.f32 %v144
    %v147 = vpack.c.bf16 %v146, %v145
    %v148 = vld [vmem:[#allocation6] sm:$0xf]
    %v149 = vld [vmem:[#allocation6 + $0x4] sm:$0xf]
    %v150 = vld [vmem:[#allocation6 + $0x8] sm:$0xf]
    %v151 = vld [vmem:[#allocation6 + $0xc] sm:$0xf]
    %v152 = vld [vmem:[#allocation6 + $0x10] sm:$0xf]
    %v153 = vld [vmem:[#allocation6 + $0x14] sm:$0xf]
    %v154 = vld [vmem:[#allocation6 + $0x18] sm:$0xf]
    %v155 = vld [vmem:[#allocation6 + $0x1c] sm:$0xf]
    %v156 = vld [vmem:[#allocation6 + $0x20] sm:$0xf]
    %v157 = vld [vmem:[#allocation6 + $0x24] sm:$0xf]
    %v158 = vld [vmem:[#allocation6 + $0x28] sm:$0xf]
    %v159 = vld [vmem:[#allocation6 + $0x2c] sm:$0xf]
    %v160 = vld [vmem:[#allocation6 + $0x30] sm:$0xf]
    %v161 = vld [vmem:[#allocation6 + $0x34] sm:$0xf]
    %v162 = vld [vmem:[#allocation6 + $0x38] sm:$0xf]
    %v163 = vld [vmem:[#allocation6 + $0x3c] sm:$0xf]
    %v180 = vunpack.c.l.b16 %v148
    %v181 = vunpack.c.l.b16 %v149
    %v182 = vunpack.c.l.b16 %v150
    %v183 = vunpack.c.l.b16 %v151
    %v184 = vunpack.c.l.b16 %v152
    %v185 = vunpack.c.l.b16 %v153
    %v186 = vunpack.c.l.b16 %v154
    %v187 = vunpack.c.l.b16 %v155
    %v188 = vunpack.c.l.b16 %v156
    %v189 = vunpack.c.l.b16 %v157
    %v190 = vunpack.c.l.b16 %v158
    %v191 = vunpack.c.l.b16 %v159
    %v192 = vunpack.c.l.b16 %v160
    %v193 = vunpack.c.l.b16 %v161
    %v194 = vunpack.c.l.b16 %v162
    %v195 = vunpack.c.l.b16 %v163
    %v196 = vpack.c.b16 %v181, %v180
    %v197 = vpack.c.b16 %v183, %v182
    %v198 = vpack.c.b16 %v185, %v184
    %v199 = vpack.c.b16 %v187, %v186
    %v200 = vpack.c.b16 %v189, %v188
    %v201 = vpack.c.b16 %v191, %v190
    %v202 = vpack.c.b16 %v193, %v192
    %v203 = vpack.c.b16 %v195, %v194
    %212 = vmatprep.subr.bf16.mxu0 0
    %213 = vmatpush1.bf16.msra.mxu0 %v196
    %214 = vmatprep.subr.bf16.mxu0 0
    %215 = vmatpush1.bf16.msra.mxu0 %v197
    %216 = vmatprep.subr.bf16.mxu0 0
    %217 = vmatpush1.bf16.msra.mxu0 %v198
    %218 = vmatprep.subr.bf16.mxu0 0
    %219 = vmatpush1.bf16.msra.mxu0 %v199
    %220 = vmatprep.subr.bf16.mxu0 0
    %221 = vmatpush1.bf16.msra.mxu0 %v200
    %222 = vmatprep.subr.bf16.mxu0 0
    %223 = vmatpush1.bf16.msra.mxu0 %v201
    %224 = vmatprep.subr.bf16.mxu0 0
    %225 = vmatpush1.bf16.msra.mxu0 %v202
    %226 = vmatprep.subr.bf16.mxu0 0
    %227 = vmatpush1.bf16.msra.mxu0 %v203
    %228 = vmatprep.subr.bf16.mxu0 0
    %229 = vmatpush1.bf16.msra.mxu0 0
    %230 = vmatprep.subr.bf16.mxu0 0
    %231 = vmatpush1.bf16.msra.mxu0 0
    %232 = vmatprep.subr.bf16.mxu0 0
    %233 = vmatpush1.bf16.msra.mxu0 0
    %234 = vmatprep.subr.bf16.mxu0 0
    %235 = vmatpush1.bf16.msra.mxu0 0
    %236 = vmatprep.subr.bf16.mxu0 0
    %237 = vmatpush1.bf16.msra.mxu0 0
    %238 = vmatprep.subr.bf16.mxu0 0
    %239 = vmatpush1.bf16.msra.mxu0 0
    %240 = vmatprep.subr.bf16.mxu0 0
    %241 = vmatpush1.bf16.msra.mxu0 0
    %242 = vmatprep.subr.bf16.mxu0 0
    %243 = vmatpush1.bf16.msra.mxu0 0
    %244 = vmatprep.mubr.bf16.mxu0 0
    %245 = vmatmul.mubr.bf16.gmra.mrb[0].mxu0 %v147
    %v246 = vpop.f32.mrb[0].mxu0
    %v247 = vadd.f32 0.0, %v246
    %v248 = vpop.f32.mrb[0].mxu0
    %v249 = vpop.f32.mrb[0].mxu0
    %v250 = vadd.f32 0.0, %v249
    %v251 = vpop.f32.mrb[0].mxu0
    %252 = vdwg.mxu0
    %v253 = vld [vmem:[#allocation6 + $0xc8] sm:$0xf]
    %v254 = vld [vmem:[#allocation6 + $0xcc] sm:$0xf]
    %v255 = vunpack.c.l.bf16 %v253
    %v256 = vunpack.c.l.bf16 %v254
    %v257 = vld [vmem:[#allocation6 + $0xd0] sm:$0xf]
    %v258 = vld [vmem:[#allocation6 + $0xd4] sm:$0xf]
    %v259 = vunpack.c.l.bf16 %v257
    %v260 = vunpack.c.l.bf16 %v258
    %v261 = vld [vmem:[#allocation6 + $0xd8] sm:$0xf]
    %v262 = vld [vmem:[#allocation6 + $0xdc] sm:$0xf]
    %v263 = vunpack.c.l.bf16 %v261
    %v264 = vunpack.c.l.bf16 %v262
    %v265 = vld [vmem:[#allocation6 + $0xe0] sm:$0xf]
    %v266 = vld [vmem:[#allocation6 + $0xe4] sm:$0xf]
    %v267 = vunpack.c.l.bf16 %v265
    %v268 = vunpack.c.l.bf16 %v266
    %v269 = vld [vmem:[#allocation6 + $0xe8] sm:$0xf]
    %v270 = vld [vmem:[#allocation6 + $0xec] sm:$0xf]
    %v271 = vunpack.c.l.bf16 %v269
    %v272 = vunpack.c.l.bf16 %v270
    %v273 = vld [vmem:[#allocation6 + $0xf0] sm:$0xf]
    %v274 = vld [vmem:[#allocation6 + $0xf4] sm:$0xf]
    %v275 = vunpack.c.l.bf16 %v273
    %v276 = vunpack.c.l.bf16 %v274
    %vm277 = vcmask 261120
    %v278 = vsel %vm277, %v247, 0.0
    %279 = vadd.xlane.f32.xlu0 %v278
    %v280 = vpop.xlane.xlu0 %279
    %v281 = vsel %vm277, %v250, 0.0
    %282 = vadd.xlane.f32.xlu0 %v281
    %v283 = vpop.xlane.xlu0 %282
    %v284 = vrcp.pop 32.0
    %v285 = vmul.f32 %v280, %v284
    %v286 = vmul.f32 %v283, %v284
    %v287 = vsub.f32 %v247, %v285
    %v288 = vsub.f32 %v250, %v286
    %v289 = vmul.f32 %v287, %v287
    %v290 = vmul.f32 %v288, %v288
    %v291 = vsel %vm277, %v289, 0.0
    %292 = vadd.xlane.f32.xlu0 %v291
    %v293 = vpop.xlane.xlu0 %292
    %v294 = vsel %vm277, %v290, 0.0
    %295 = vadd.xlane.f32.xlu0 %v294
    %v296 = vpop.xlane.xlu0 %295
    %v297 = vmul.f32 %v293, %v284
    %v298 = vmul.f32 %v296, %v284
    %v299 = vadd.f32 %v297, 1e-05
    %v300 = vadd.f32 %v298, 1e-05
    %v301 = vrsqrt.pop %v299
    %v302 = vrsqrt.pop %v300
    %v303 = vmul.f32 %v287, %v301
    %v304 = vmul.f32 %v288, %v302
    %v305 = vmul.f32 %v303, %v255
    %v306 = vmul.f32 %v304, %v256
    %v307 = vadd.f32 %v305, %v259
    %v308 = vadd.f32 %v306, %v260
    %v309 = vld [vmem:[#allocation6 + $0x80] sm:$0xf]
    %v310 = vld [vmem:[#allocation6 + $0x84] sm:$0xf]
    %v311 = vld [vmem:[#allocation6 + $0x88] sm:$0xf]
    %v312 = vld [vmem:[#allocation6 + $0x8c] sm:$0xf]
    %v313 = vpack.c.bf16 %v308, %v307
    %v318 = vunpack.c.l.b16 %v309
    %v319 = vunpack.c.l.b16 %v310
    %v320 = vunpack.c.l.b16 %v311
    %v321 = vunpack.c.l.b16 %v312
    %v322 = vpack.c.b16 %v319, %v318
    %v323 = vpack.c.b16 %v321, %v320
    %v327 = vsel %vm277, %v313, 0
    %329 = vmatprep.subr.bf16.mxu0 0
    %330 = vmatpush1.bf16.msra.mxu0 %v322
    %331 = vmatprep.subr.bf16.mxu0 0
    %332 = vmatpush1.bf16.msra.mxu0 %v323
    %333 = vmatprep.subr.bf16.mxu0 0
    %334 = vmatpush1.bf16.msra.mxu0 0
    %335 = vmatprep.subr.bf16.mxu0 0
    %336 = vmatpush1.bf16.msra.mxu0 0
    %337 = vmatprep.subr.bf16.mxu0 0
    %338 = vmatpush1.bf16.msra.mxu0 0
    %339 = vmatprep.subr.bf16.mxu0 0
    %340 = vmatpush1.bf16.msra.mxu0 0
    %341 = vmatprep.subr.bf16.mxu0 0
    %342 = vmatpush1.bf16.msra.mxu0 0
    %343 = vmatprep.subr.bf16.mxu0 0
    %344 = vmatpush1.bf16.msra.mxu0 0
    %345 = vmatprep.subr.bf16.mxu0 0
    %346 = vmatpush1.bf16.msra.mxu0 0
    %347 = vmatprep.subr.bf16.mxu0 0
    %348 = vmatpush1.bf16.msra.mxu0 0
    %349 = vmatprep.subr.bf16.mxu0 0
    %350 = vmatpush1.bf16.msra.mxu0 0
    %351 = vmatprep.subr.bf16.mxu0 0
    %352 = vmatpush1.bf16.msra.mxu0 0
    %353 = vmatprep.subr.bf16.mxu0 0
    %354 = vmatpush1.bf16.msra.mxu0 0
    %355 = vmatprep.subr.bf16.mxu0 0
    %356 = vmatpush1.bf16.msra.mxu0 0
    %357 = vmatprep.subr.bf16.mxu0 0
    %358 = vmatpush1.bf16.msra.mxu0 0
    %359 = vmatprep.subr.bf16.mxu0 0
    %360 = vmatpush1.bf16.msra.mxu0 0
    %361 = vmatprep.mubr.bf16.mxu0 0
    %362 = vmatmul.mubr.bf16.gmra.mrb[0].mxu0 %v327
    %v363 = vpop.f32.mrb[0].mxu0
    %v364 = vadd.f32 0.0, %v363
    %v365 = vpop.f32.mrb[0].mxu0
    %v366 = vpop.f32.mrb[0].mxu0
    %v367 = vadd.f32 0.0, %v366
    %v368 = vpop.f32.mrb[0].mxu0
    %369 = vdwg.mxu0
    %v370 = vpack.c.bf16 %v367, %v364
    %v371 = vld [vmem:[#allocation6 + $0xc0] sm:$0xf]
    %v372 = vld [vmem:[#allocation6 + $0xc4] sm:$0xf]
    %v373 = vunpack.c.l.bf16 %v371
    %v374 = vunpack.c.l.bf16 %v372
    %376 = vrot.lane.b32.xlu0 %v370, 96
    %v377 = vpop.permute.xlu0 %376
    %v379 = vsel %vm277, %v370, 0
    %v382 = vsel %vm277, %v377, 0
    %384 = vmatprep.subr.bf16.mxu0 0
    %385 = vmatpush1.bf16.xpose.msra.mxu0 %v382
    %386 = vmatprep.subr.bf16.mxu0 0
    %387 = vmatpush1.bf16.xpose.msra.mxu0 0
    %388 = vmatprep.subr.bf16.mxu0 0
    %389 = vmatpush1.bf16.xpose.msra.mxu0 0
    %390 = vmatprep.subr.bf16.mxu0 0
    %391 = vmatpush1.bf16.xpose.msra.mxu0 0
    %392 = vmatprep.subr.bf16.mxu0 0
    %393 = vmatpush1.bf16.xpose.msra.mxu0 0
    %394 = vmatprep.subr.bf16.mxu0 0
    %395 = vmatpush1.bf16.xpose.msra.mxu0 0
    %396 = vmatprep.subr.bf16.mxu0 0
    %397 = vmatpush1.bf16.xpose.msra.mxu0 0
    %398 = vmatprep.subr.bf16.mxu0 0
    %399 = vmatpush1.bf16.xpose.msra.mxu0 0
    %400 = vmatprep.subr.bf16.mxu0 0
    %401 = vmatpush1.bf16.xpose.msra.mxu0 0
    %402 = vmatprep.subr.bf16.mxu0 0
    %403 = vmatpush1.bf16.xpose.msra.mxu0 0
    %404 = vmatprep.subr.bf16.mxu0 0
    %405 = vmatpush1.bf16.xpose.msra.mxu0 0
    %406 = vmatprep.subr.bf16.mxu0 0
    %407 = vmatpush1.bf16.xpose.msra.mxu0 0
    %408 = vmatprep.subr.bf16.mxu0 0
    %409 = vmatpush1.bf16.xpose.msra.mxu0 0
    %410 = vmatprep.subr.bf16.mxu0 0
    %411 = vmatpush1.bf16.xpose.msra.mxu0 0
    %412 = vmatprep.subr.bf16.mxu0 0
    %413 = vmatpush1.bf16.xpose.msra.mxu0 0
    %414 = vmatprep.subr.bf16.mxu0 0
    %415 = vmatpush1.bf16.xpose.msra.mxu0 0
    %416 = vmatprep.mubr.bf16.mxu0 0
    %417 = vmatmul.mubr.bf16.gmra.mrb[0].mxu0 %v379
    %v418 = vpop.f32.mrb[0].mxu0
    %v419 = vadd.f32 %v373, %v418
    %v420 = vpop.f32.mrb[0].mxu0
    %v421 = vpop.f32.mrb[0].mxu0
    %v422 = vadd.f32 %v374, %v421
    %v423 = vpop.f32.mrb[0].mxu0
    %424 = vdwg.mxu0
    %vm425 = vcmask 130048
    %v426 = vsel %vm425, %v419, -inf
    %427 = vmax.xlane.f32.xlu0 %v426
    %v428 = vpop.xlane.xlu0 %427
    %v429 = vsel %vm425, %v422, -inf
    %430 = vmax.xlane.f32.xlu0 %v429
    %v431 = vpop.xlane.xlu0 %430
    %v432 = vsub.f32 %v419, %v428
    %v433 = vsub.f32 %v422, %v431
    %v434 = vmul.f32 %v432, 1.442695
    %v435 = vpow.pop %v434
    %v436 = vmul.f32 %v433, 1.442695
    %v437 = vpow.pop %v436
    %v438 = vsel %vm425, %v435, 0.0
    %439 = vadd.xlane.f32.xlu0 %v438
    %v440 = vpop.xlane.xlu0 %439
    %v441 = vsel %vm425, %v437, 0.0
    %442 = vadd.xlane.f32.xlu0 %v441
    %v443 = vpop.xlane.xlu0 %442
    %v444 = vrcp.pop %v440
    %v445 = vrcp.pop %v443
    %v446 = vmul.f32 %v435, %v444
    %v447 = vmul.f32 %v437, %v445
    %v448 = vpack.c.bf16 %v447, %v446
    %449 = vrot.lane.b32.xlu0 %v370, 64
    %v450 = vpop.permute.xlu0 %449
    %v453 = vsel %vm425, %v448, 0
    %455 = vmatprep.subr.bf16.mxu0 0
    %456 = vmatpush1.bf16.msra.mxu0 %v450
    %457 = vmatprep.subr.bf16.mxu0 0
    %458 = vmatpush1.bf16.msra.mxu0 0
    %459 = vmatprep.subr.bf16.mxu0 0
    %460 = vmatpush1.bf16.msra.mxu0 0
    %461 = vmatprep.subr.bf16.mxu0 0
    %462 = vmatpush1.bf16.msra.mxu0 0
    %463 = vmatprep.subr.bf16.mxu0 0
    %464 = vmatpush1.bf16.msra.mxu0 0
    %465 = vmatprep.subr.bf16.mxu0 0
    %466 = vmatpush1.bf16.msra.mxu0 0
    %467 = vmatprep.subr.bf16.mxu0 0
    %468 = vmatpush1.bf16.msra.mxu0 0
    %469 = vmatprep.subr.bf16.mxu0 0
    %470 = vmatpush1.bf16.msra.mxu0 0
    %471 = vmatprep.subr.bf16.mxu0 0
    %472 = vmatpush1.bf16.msra.mxu0 0
    %473 = vmatprep.subr.bf16.mxu0 0
    %474 = vmatpush1.bf16.msra.mxu0 0
    %475 = vmatprep.subr.bf16.mxu0 0
    %476 = vmatpush1.bf16.msra.mxu0 0
    %477 = vmatprep.subr.bf16.mxu0 0
    %478 = vmatpush1.bf16.msra.mxu0 0
    %479 = vmatprep.subr.bf16.mxu0 0
    %480 = vmatpush1.bf16.msra.mxu0 0
    %481 = vmatprep.subr.bf16.mxu0 0
    %482 = vmatpush1.bf16.msra.mxu0 0
    %483 = vmatprep.subr.bf16.mxu0 0
    %484 = vmatpush1.bf16.msra.mxu0 0
    %485 = vmatprep.subr.bf16.mxu0 0
    %486 = vmatpush1.bf16.msra.mxu0 0
    %487 = vmatprep.mubr.bf16.mxu0 0
    %488 = vmatmul.mubr.bf16.gmra.mrb[0].mxu0 %v453
    %v489 = vpop.f32.mrb[0].mxu0
    %v490 = vadd.f32 0.0, %v489
    %v491 = vpop.f32.mrb[0].mxu0
    %v492 = vpop.f32.mrb[0].mxu0
    %v493 = vadd.f32 0.0, %v492
    %v494 = vpop.f32.mrb[0].mxu0
    %495 = vdwg.mxu0
    %v496 = vld [vmem:[#allocation6 + $0x90] sm:$0xf]
    %v497 = vld [vmem:[#allocation6 + $0x94] sm:$0xf]
    %v498 = vld [vmem:[#allocation6 + $0x98] sm:$0xf]
    %v499 = vld [vmem:[#allocation6 + $0x9c] sm:$0xf]
    %v500 = vpack.c.bf16 %v493, %v490
    %v505 = vunpack.c.l.b16 %v496
    %v506 = vunpack.c.l.b16 %v497
    %v507 = vunpack.c.l.b16 %v498
    %v508 = vunpack.c.l.b16 %v499
    %v509 = vpack.c.b16 %v506, %v505
    %v510 = vpack.c.b16 %v508, %v507
    %v514 = vsel %vm277, %v500, 0
    %516 = vmatprep.subr.bf16.mxu0 0
    %517 = vmatpush1.bf16.msra.mxu0 %v509
    %518 = vmatprep.subr.bf16.mxu0 0
    %519 = vmatpush1.bf16.msra.mxu0 %v510
    %520 = vmatprep.subr.bf16.mxu0 0
    %521 = vmatpush1.bf16.msra.mxu0 0
    %522 = vmatprep.subr.bf16.mxu0 0
    %523 = vmatpush1.bf16.msra.mxu0 0
    %524 = vmatprep.subr.bf16.mxu0 0
    %525 = vmatpush1.bf16.msra.mxu0 0
    %526 = vmatprep.subr.bf16.mxu0 0
    %527 = vmatpush1.bf16.msra.mxu0 0
    %528 = vmatprep.subr.bf16.mxu0 0
    %529 = vmatpush1.bf16.msra.mxu0 0
    %530 = vmatprep.subr.bf16.mxu0 0
    %531 = vmatpush1.bf16.msra.mxu0 0
    %532 = vmatprep.subr.bf16.mxu0 0
    %533 = vmatpush1.bf16.msra.mxu0 0
    %534 = vmatprep.subr.bf16.mxu0 0
    %535 = vmatpush1.bf16.msra.mxu0 0
    %536 = vmatprep.subr.bf16.mxu0 0
    %537 = vmatpush1.bf16.msra.mxu0 0
    %538 = vmatprep.subr.bf16.mxu0 0
    %539 = vmatpush1.bf16.msra.mxu0 0
    %540 = vmatprep.subr.bf16.mxu0 0
    %541 = vmatpush1.bf16.msra.mxu0 0
    %542 = vmatprep.subr.bf16.mxu0 0
    %543 = vmatpush1.bf16.msra.mxu0 0
    %544 = vmatprep.subr.bf16.mxu0 0
    %545 = vmatpush1.bf16.msra.mxu0 0
    %546 = vmatprep.subr.bf16.mxu0 0
    %547 = vmatpush1.bf16.msra.mxu0 0
    %548 = vmatprep.mubr.bf16.mxu0 0
    %549 = vmatmul.mubr.bf16.gmra.mrb[0].mxu0 %v514
    %v550 = vpop.f32.mrb[0].mxu0
    %v551 = vadd.f32 0.0, %v550
    %v552 = vpop.f32.mrb[0].mxu0
    %v553 = vpop.f32.mrb[0].mxu0
    %v554 = vadd.f32 0.0, %v553
    %v555 = vpop.f32.mrb[0].mxu0
    %556 = vdwg.mxu0
    %v557 = vadd.f32 %v247, %v551
    %v558 = vadd.f32 %v250, %v554
    %v559 = vsel %vm277, %v557, 0.0
    %560 = vadd.xlane.f32.xlu0 %v559
    %v561 = vpop.xlane.xlu0 %560
    %v562 = vsel %vm277, %v558, 0.0
    %563 = vadd.xlane.f32.xlu0 %v562
    %v564 = vpop.xlane.xlu0 %563
    %v565 = vmul.f32 %v561, %v284
    %v566 = vmul.f32 %v564, %v284
    %v567 = vsub.f32 %v557, %v565
    %v568 = vsub.f32 %v558, %v566
    %v569 = vmul.f32 %v567, %v567
    %v570 = vmul.f32 %v568, %v568
    %v571 = vsel %vm277, %v569, 0.0
    %572 = vadd.xlane.f32.xlu0 %v571
    %v573 = vpop.xlane.xlu0 %572
    %v574 = vsel %vm277, %v570, 0.0
    %575 = vadd.xlane.f32.xlu0 %v574
    %v576 = vpop.xlane.xlu0 %575
    %v577 = vmul.f32 %v573, %v284
    %v578 = vmul.f32 %v576, %v284
    %v579 = vadd.f32 %v577, 1e-05
    %v580 = vadd.f32 %v578, 1e-05
    %v581 = vrsqrt.pop %v579
    %v582 = vrsqrt.pop %v580
    %v583 = vmul.f32 %v567, %v581
    %v584 = vmul.f32 %v568, %v582
    %v585 = vmul.f32 %v583, %v263
    %v586 = vmul.f32 %v584, %v264
    %v587 = vadd.f32 %v585, %v267
    %v588 = vadd.f32 %v586, %v268
    %v589 = vld [vmem:[#allocation6 + $0xa0] sm:$0xf]
    %v590 = vld [vmem:[#allocation6 + $0xa4] sm:$0xf]
    %v591 = vld [vmem:[#allocation6 + $0xa8] sm:$0xf]
    %v592 = vld [vmem:[#allocation6 + $0xac] sm:$0xf]
    %v593 = vpack.c.bf16 %v588, %v587
    %v598 = vunpack.c.l.b16 %v589
    %v599 = vunpack.c.l.b16 %v590
    %v600 = vunpack.c.l.b16 %v591
    %v601 = vunpack.c.l.b16 %v592
    %v602 = vpack.c.b16 %v599, %v598
    %v603 = vpack.c.b16 %v601, %v600
    %v607 = vsel %vm277, %v593, 0
    %609 = vmatprep.subr.bf16.mxu0 0
    %610 = vmatpush1.bf16.msra.mxu0 %v602
    %611 = vmatprep.subr.bf16.mxu0 0
    %612 = vmatpush1.bf16.msra.mxu0 %v603
    %613 = vmatprep.subr.bf16.mxu0 0
    %614 = vmatpush1.bf16.msra.mxu0 0
    %615 = vmatprep.subr.bf16.mxu0 0
    %616 = vmatpush1.bf16.msra.mxu0 0
    %617 = vmatprep.subr.bf16.mxu0 0
    %618 = vmatpush1.bf16.msra.mxu0 0
    %619 = vmatprep.subr.bf16.mxu0 0
    %620 = vmatpush1.bf16.msra.mxu0 0
    %621 = vmatprep.subr.bf16.mxu0 0
    %622 = vmatpush1.bf16.msra.mxu0 0
    %623 = vmatprep.subr.bf16.mxu0 0
    %624 = vmatpush1.bf16.msra.mxu0 0
    %625 = vmatprep.subr.bf16.mxu0 0
    %626 = vmatpush1.bf16.msra.mxu0 0
    %627 = vmatprep.subr.bf16.mxu0 0
    %628 = vmatpush1.bf16.msra.mxu0 0
    %629 = vmatprep.subr.bf16.mxu0 0
    %630 = vmatpush1.bf16.msra.mxu0 0
    %631 = vmatprep.subr.bf16.mxu0 0
    %632 = vmatpush1.bf16.msra.mxu0 0
    %633 = vmatprep.subr.bf16.mxu0 0
    %634 = vmatpush1.bf16.msra.mxu0 0
    %635 = vmatprep.subr.bf16.mxu0 0
    %636 = vmatpush1.bf16.msra.mxu0 0
    %637 = vmatprep.subr.bf16.mxu0 0
    %638 = vmatpush1.bf16.msra.mxu0 0
    %639 = vmatprep.subr.bf16.mxu0 0
    %640 = vmatpush1.bf16.msra.mxu0 0
    %641 = vmatprep.mubr.bf16.mxu0 0
    %642 = vmatmul.mubr.bf16.gmra.mrb[0].mxu0 %v607
    %v643 = vpop.f32.mrb[0].mxu0
    %v644 = vadd.f32 0.0, %v643
    %v645 = vpop.f32.mrb[0].mxu0
    %v646 = vpop.f32.mrb[0].mxu0
    %v647 = vadd.f32 0.0, %v646
    %v648 = vpop.f32.mrb[0].mxu0
    %649 = vdwg.mxu0
    %v650 = vmul.f32 %v644, %v644
    %v651 = vmul.f32 %v647, %v647
    %v652 = vmul.f32 %v644, %v650
    %v653 = vmul.f32 %v647, %v651
    %v654 = vmul.f32 %v652, 0.044715
    %v655 = vmul.f32 %v653, 0.044715
    %v656 = vadd.f32 %v644, %v654
    %v657 = vadd.f32 %v647, %v655
    %v658 = vmul.f32 %v656, 0.7978846
    %v659 = vmul.f32 %v657, 0.7978846
    %v660 = vtanh.pop %v658
    %v661 = vtanh.pop %v659
    %v662 = vadd.f32 %v660, 1.0
    %v663 = vadd.f32 %v661, 1.0
    %v664 = vmul.f32 %v662, 0.5
    %v665 = vmul.f32 %v663, 0.5
    %v666 = vmul.f32 %v644, %v664
    %v667 = vmul.f32 %v647, %v665
    %v668 = vld [vmem:[#allocation6 + $0x40] sm:$0xf]
    %v669 = vld [vmem:[#allocation6 + $0x44] sm:$0xf]
    %v670 = vld [vmem:[#allocation6 + $0x48] sm:$0xf]
    %v671 = vld [vmem:[#allocation6 + $0x4c] sm:$0xf]
    %v672 = vld [vmem:[#allocation6 + $0x50] sm:$0xf]
    %v673 = vld [vmem:[#allocation6 + $0x54] sm:$0xf]
    %v674 = vld [vmem:[#allocation6 + $0x58] sm:$0xf]
    %v675 = vld [vmem:[#allocation6 + $0x5c] sm:$0xf]
    %v676 = vld [vmem:[#allocation6 + $0x60] sm:$0xf]
    %v677 = vld [vmem:[#allocation6 + $0x64] sm:$0xf]
    %v678 = vld [vmem:[#allocation6 + $0x68] sm:$0xf]
    %v679 = vld [vmem:[#allocation6 + $0x6c] sm:$0xf]
    %v680 = vld [vmem:[#allocation6 + $0x70] sm:$0xf]
    %v681 = vld [vmem:[#allocation6 + $0x74] sm:$0xf]
    %v682 = vld [vmem:[#allocation6 + $0x78] sm:$0xf]
    %v683 = vld [vmem:[#allocation6 + $0x7c] sm:$0xf]
    %v684 = vpack.c.bf16 %v667, %v666
    %v701 = vunpack.c.l.b16 %v668
    %v702 = vunpack.c.l.b16 %v669
    %v703 = vunpack.c.l.b16 %v670
    %v704 = vunpack.c.l.b16 %v671
    %v705 = vunpack.c.l.b16 %v672
    %v706 = vunpack.c.l.b16 %v673
    %v707 = vunpack.c.l.b16 %v674
    %v708 = vunpack.c.l.b16 %v675
    %v709 = vunpack.c.l.b16 %v676
    %v710 = vunpack.c.l.b16 %v677
    %v711 = vunpack.c.l.b16 %v678
    %v712 = vunpack.c.l.b16 %v679
    %v713 = vunpack.c.l.b16 %v680
    %v714 = vunpack.c.l.b16 %v681
    %v715 = vunpack.c.l.b16 %v682
    %v716 = vunpack.c.l.b16 %v683
    %v717 = vpack.c.b16 %v702, %v701
    %v718 = vpack.c.b16 %v704, %v703
    %v719 = vpack.c.b16 %v706, %v705
    %v720 = vpack.c.b16 %v708, %v707
    %v721 = vpack.c.b16 %v710, %v709
    %v722 = vpack.c.b16 %v712, %v711
    %v723 = vpack.c.b16 %v714, %v713
    %v724 = vpack.c.b16 %v716, %v715
    %733 = vmatprep.subr.bf16.mxu0 0
    %734 = vmatpush1.bf16.msra.mxu0 %v717
    %735 = vmatprep.subr.bf16.mxu0 0
    %736 = vmatpush1.bf16.msra.mxu0 %v718
    %737 = vmatprep.subr.bf16.mxu0 0
    %738 = vmatpush1.bf16.msra.mxu0 %v719
    %739 = vmatprep.subr.bf16.mxu0 0
    %740 = vmatpush1.bf16.msra.mxu0 %v720
    %741 = vmatprep.subr.bf16.mxu0 0
    %742 = vmatpush1.bf16.msra.mxu0 %v721
    %743 = vmatprep.subr.bf16.mxu0 0
    %744 = vmatpush1.bf16.msra.mxu0 %v722
    %745 = vmatprep.subr.bf16.mxu0 0
    %746 = vmatpush1.bf16.msra.mxu0 %v723
    %747 = vmatprep.subr.bf16.mxu0 0
    %748 = vmatpush1.bf16.msra.mxu0 %v724
    %749 = vmatprep.subr.bf16.mxu0 0
    %750 = vmatpush1.bf16.msra.mxu0 0
    %751 = vmatprep.subr.bf16.mxu0 0
    %752 = vmatpush1.bf16.msra.mxu0 0
    %753 = vmatprep.subr.bf16.mxu0 0
    %754 = vmatpush1.bf16.msra.mxu0 0
    %755 = vmatprep.subr.bf16.mxu0 0
    %756 = vmatpush1.bf16.msra.mxu0 0
    %757 = vmatprep.subr.bf16.mxu0 0
    %758 = vmatpush1.bf16.msra.mxu0 0
    %759 = vmatprep.subr.bf16.mxu0 0
    %760 = vmatpush1.bf16.msra.mxu0 0
    %761 = vmatprep.subr.bf16.mxu0 0
    %762 = vmatpush1.bf16.msra.mxu0 0
    %763 = vmatprep.subr.bf16.mxu0 0
    %764 = vmatpush1.bf16.msra.mxu0 0
    %765 = vmatprep.mubr.bf16.mxu0 0
    %766 = vmatmul.mubr.bf16.gmra.mrb[0].mxu0 %v684
    %v767 = vpop.f32.mrb[0].mxu0
    %v768 = vadd.f32 0.0, %v767
    %v769 = vpop.f32.mrb[0].mxu0
    %v770 = vpop.f32.mrb[0].mxu0
    %v771 = vadd.f32 0.0, %v770
    %v772 = vpop.f32.mrb[0].mxu0
    %773 = vdwg.mxu0
    %v774 = vadd.f32 %v557, %v768
    %v775 = vadd.f32 %v558, %v771
    %v776 = vsel %vm277, %v774, 0.0
    %777 = vadd.xlane.f32.xlu0 %v776
    %v778 = vpop.xlane.xlu0 %777
    %v779 = vsel %vm277, %v775, 0.0
    %780 = vadd.xlane.f32.xlu0 %v779
    %v781 = vpop.xlane.xlu0 %780
    %v782 = vmul.f32 %v778, %v284
    %v783 = vmul.f32 %v781, %v284
    %v784 = vsub.f32 %v774, %v782
    %v785 = vsub.f32 %v775, %v783
    %v786 = vmul.f32 %v784, %v784
    %v787 = vmul.f32 %v785, %v785
    %v788 = vsel %vm277, %v786, 0.0
    %789 = vadd.xlane.f32.xlu0 %v788
    %v790 = vpop.xlane.xlu0 %789
    %v791 = vsel %vm277, %v787, 0.0
    %792 = vadd.xlane.f32.xlu0 %v791
    %v793 = vpop.xlane.xlu0 %792
    %v794 = vmul.f32 %v790, %v284
    %v795 = vmul.f32 %v793, %v284
    %v796 = vadd.f32 %v794, 1e-05
    %v797 = vadd.f32 %v795, 1e-05
    %v798 = vrsqrt.pop %v796
    %v799 = vrsqrt.pop %v797
    %v800 = vmul.f32 %v784, %v798
    %v801 = vmul.f32 %v785, %v799
    %v802 = vmul.f32 %v800, %v271
    %v803 = vmul.f32 %v801, %v272
    %v804 = vadd.f32 %v802, %v275
    %v805 = vadd.f32 %v803, %v276
    %v806 = vld [vmem:[#allocation6 + $0xb0] sm:$0xf]
    %v807 = vld [vmem:[#allocation6 + $0xb4] sm:$0xf]
    %v808 = vld [vmem:[#allocation6 + $0xb8] sm:$0xf]
    %v809 = vld [vmem:[#allocation6 + $0xbc] sm:$0xf]
    %v810 = vpack.c.bf16 %v805, %v804
    %v815 = vunpack.c.l.b16 %v806
    %v816 = vunpack.c.l.b16 %v807
    %v817 = vunpack.c.l.b16 %v808
    %v818 = vunpack.c.l.b16 %v809
    %v819 = vpack.c.b16 %v816, %v815
    %v820 = vpack.c.b16 %v818, %v817
    %v824 = vsel %vm277, %v810, 0
    %826 = vmatprep.subr.bf16.mxu0 0
    %827 = vmatpush1.bf16.msra.mxu0 %v819
    %828 = vmatprep.subr.bf16.mxu0 0
    %829 = vmatpush1.bf16.msra.mxu0 %v820
    %830 = vmatprep.subr.bf16.mxu0 0
    %831 = vmatpush1.bf16.msra.mxu0 0
    %832 = vmatprep.subr.bf16.mxu0 0
    %833 = vmatpush1.bf16.msra.mxu0 0
    %834 = vmatprep.subr.bf16.mxu0 0
    %835 = vmatpush1.bf16.msra.mxu0 0
    %836 = vmatprep.subr.bf16.mxu0 0
    %837 = vmatpush1.bf16.msra.mxu0 0
    %838 = vmatprep.subr.bf16.mxu0 0
    %839 = vmatpush1.bf16.msra.mxu0 0
    %840 = vmatprep.subr.bf16.mxu0 0
    %841 = vmatpush1.bf16.msra.mxu0 0
    %842 = vmatprep.subr.bf16.mxu0 0
    %843 = vmatpush1.bf16.msra.mxu0 0
    %844 = vmatprep.subr.bf16.mxu0 0
    %845 = vmatpush1.bf16.msra.mxu0 0
    %846 = vmatprep.subr.bf16.mxu0 0
    %847 = vmatpush1.bf16.msra.mxu0 0
    %848 = vmatprep.subr.bf16.mxu0 0
    %849 = vmatpush1.bf16.msra.mxu0 0
    %850 = vmatprep.subr.bf16.mxu0 0
    %851 = vmatpush1.bf16.msra.mxu0 0
    %852 = vmatprep.subr.bf16.mxu0 0
    %853 = vmatpush1.bf16.msra.mxu0 0
    %854 = vmatprep.subr.bf16.mxu0 0
    %855 = vmatpush1.bf16.msra.mxu0 0
    %856 = vmatprep.subr.bf16.mxu0 0
    %857 = vmatpush1.bf16.msra.mxu0 0
    %858 = vmatprep.mubr.bf16.mxu0 0
    %859 = vmatmul.mubr.bf16.gmra.mrb[0].mxu0 %v824
    %v860 = vpop.f32.mrb[0].mxu0
    %v861 = vadd.f32 0.0, %v860
    %v862 = vpop.f32.mrb[0].mxu0
    %v863 = vpop.f32.mrb[0].mxu0
    %v864 = vadd.f32 0.0, %v863
    %v865 = vpop.f32.mrb[0].mxu0
    %866 = vdwg.mxu0
    %867 = vst [vmem:[#allocation7] sm:$0xff] %v861
    %868 = vst [vmem:[#allocation7 + $0x8] sm:$0xff] %v864
    // Predicated region
    $region18: #{simple_callable_hf_model_forward.1} parent=1 // pred_check
      _
    $region19: #{simple_callable_hf_model_forward.1} parent=1 // pred_check_branch
      %870 = sbr.rel (0) target = $region21
    $region20: #{simple_callable_hf_model_forward.1} parent=1 // pred_region
      %s872 = ssub.s32 256, 256
      %873 = vsyncadd [#allocation4], %s872
      %s874 = sshll.u32 [#allocation7], 4
      %s875 = int_to_ptr.vmem [resolvable:$true] %s874
      %880 = dma.vmem_to_hbm [thread:$0]  %s875, 256, %s2, [#allocation4], 128, 128, 8
    $region21: #{simple_callable_hf_model_forward.1} parent=1 // pred_fallthru
      _
    // Predicated region
    $region22: #{simple_callable_hf_model_forward.1} parent=1 // pred_check
      _
    $region23: #{simple_callable_hf_model_forward.1} parent=1 // pred_check_branch
      %882 = sbr.rel (0) target = $region25
    $region24: #{simple_callable_hf_model_forward.1} parent=1 // pred_region
      %883 = dma.done [#allocation4], 256
    $region25: #{simple_callable_hf_model_forward.1} parent=1 // pred_fallthru
      _
    %884 = vsyncpa [#allocation3], 1
    %885 = vsyncpa [#allocation4], 1
    %886 = vsyncpa [#allocation5], 1

</llo_original>
